<compile_context>
chip_gen: v5e
topology: v5e:2x2
jax: 0.10.0
libtpu: 0.0.40
codegen_flags: <defaults>
</compile_context>

<pallas_src>
import math

import jax
import jax.numpy as jnp
from jax.experimental import pallas as pl
from jax.experimental.pallas import tpu as pltpu


def _round_up(x: int, m: int) -> int:
    return ((x + m - 1) // m) * m


def _mlp_kernel(x_ref, w1_ref, b1_ref, w2_ref, b2_ref, w3_ref, b3_ref, o_ref):
    """Fused 3-layer MLP on one (tb, S) batch tile.

    Matmuls run in bf16 on the MXU with f32 accumulation; bias-add / ReLU stay
    in f32 on the VPU. Weights/biases use constant index_maps so they stay
    VMEM-resident across grid steps.
    """
    x = x_ref[...].astype(jnp.bfloat16)
    h1 = jnp.dot(x, w1_ref[...], preferred_element_type=jnp.float32) + b1_ref[...]
    h1 = jnp.maximum(h1, 0.0).astype(jnp.bfloat16)
    h2 = jnp.dot(h1, w2_ref[...], preferred_element_type=jnp.float32) + b2_ref[...]
    h2 = jnp.maximum(h2, 0.0).astype(jnp.bfloat16)
    # TODO(synk): downstream epilogue (log-softmax / sampling prep) could be
    # fused here for free, but forward() semantics are "return logits".
    o_ref[...] = (
        jnp.dot(h2, w3_ref[...], preferred_element_type=jnp.float32) + b3_ref[...]
    )


def _pick_tile(batch: int, tile_b: int) -> int:
    """Pick a batch-tile size: big (amortizes grid-step overhead), a multiple of
    8 (sublane), and such that the grid has >= 2 steps when batch permits so
    v7x's two TensorCores both get work."""
    if batch <= 8:
        return batch  # single block equal to the full array dim
    tb = min(tile_b, max(8, _round_up(pl.cdiv(batch, 2), 8)))
    return tb


def policy_network_forward(x, params, *, tile_b=2048, min_pallas_batch=64):
    """Run the fused MLP forward pass.

    Args:
      x: (batch, state_embedding_dim), f32 or bf16 (bf16 preferred: halves DMA).
      params: dict with w1 (S,H) bf16, b1 (1,H) f32, w2 (H,H) bf16, b2 (1,H) f32,
              w3 (H,A) bf16, b3 (1,A) f32   (weights transposed vs. PyTorch).
      tile_b: max batch-tile rows per grid step.
      min_pallas_batch: batches <= this size take the fused pure-JAX fast path
        (pallas_call launch overhead dwarfs the work at tiny sizes).

    Returns:
      logits: (batch, num_agents) float32
    """
    batch, s_dim = x.shape
    hidden = params["w1"].shape[1]
    num_agents = params["w3"].shape[1]

    if batch <= min_pallas_batch:
        return _reference_forward(x, params)

    tb = _pick_tile(batch, tile_b)
    grid = (pl.cdiv(batch, tb),)  # ragged last block handled by Pallas

    def const_spec(shape):
        # Same block every step -> stays resident in VMEM.
        return pl.BlockSpec(shape, lambda i: (0, 0))

    return pl.pallas_call(
        _mlp_kernel,
        out_shape=jax.ShapeDtypeStruct((batch, num_agents), jnp.float32),
        grid=grid,
        in_specs=[
            pl.BlockSpec((tb, s_dim), lambda i: (i, 0)),  # streamed batch tile
            const_spec((s_dim, hidden)),
            const_spec((1, hidden)),
            const_spec((hidden, hidden)),
            const_spec((1, hidden)),
            const_spec((hidden, num_agents)),
            const_spec((1, num_agents)),
        ],
        # Output emitted directly at its true width: full-array last dim, so no
        # lane padding, no extra slice pass. Store traffic is num_agents*4 B/row.
        out_specs=pl.BlockSpec((tb, num_agents), lambda i: (i, 0)),
        compiler_params=pltpu.CompilerParams(
            # Shard batch tiles across v7x's two TensorCores; no-op on v5e/v6e.
            dimension_semantics=("parallel",),
        ),
    )(x, params["w1"], params["b1"], params["w2"], params["b2"],
      params["w3"], params["b3"])


def init_policy_params(key, state_embedding_dim, num_agents, hidden_dim=128):
    """Deterministic init mimicking nn.Linear default (uniform +-1/sqrt(fan_in)).

    Weights are stored as bf16 (MXU-native, half the DMA bytes); biases stay f32.
    """
    ks = jax.random.split(key, 6)

    def linear(kw, kb, fan_in, fan_out):
        bound = 1.0 / math.sqrt(fan_in)
        w = jax.random.uniform(kw, (fan_in, fan_out), jnp.float32, -bound, bound)
        b = jax.random.uniform(kb, (1, fan_out), jnp.float32, -bound, bound)
        return w.astype(jnp.bfloat16), b

    w1, b1 = linear(ks[0], ks[1], state_embedding_dim, hidden_dim)
    w2, b2 = linear(ks[2], ks[3], hidden_dim, hidden_dim)
    w3, b3 = linear(ks[4], ks[5], hidden_dim, num_agents)
    return {"w1": w1, "b1": b1, "w2": w2, "b2": b2, "w3": w3, "b3": b3}


def _reference_forward(x, params):
    """Pure-JAX reference with the identical mixed-precision recipe (also the
    tiny-batch fast path)."""
    xb = x.astype(jnp.bfloat16)
    h1 = jnp.maximum(
        jnp.dot(xb, params["w1"], preferred_element_type=jnp.float32) + params["b1"],
        0.0,
    ).astype(jnp.bfloat16)
    h2 = jnp.maximum(
        jnp.dot(h1, params["w2"], preferred_element_type=jnp.float32) + params["b2"],
        0.0,
    ).astype(jnp.bfloat16)
    return jnp.dot(h2, params["w3"], preferred_element_type=jnp.float32) + params["b3"]


if __name__ == "__main__":
    # Shapes consistent with the module: state_embedding_dim=32, num_agents=8,
    # hidden_dim=128 (module default).
    state_embedding_dim = 32
    num_agents = 8
    hidden_dim = 128

    key = jax.random.PRNGKey(0)
    k_params, k_x1, k_x2 = jax.random.split(key, 3)
    params = init_policy_params(k_params, state_embedding_dim, num_agents, hidden_dim)

    # 1) Tiny-batch path (batch=2, the select_action-style use): fast path.
    x_small = jax.random.normal(k_x1, (2, state_embedding_dim), jnp.float32)
    logits_small = jax.block_until_ready(policy_network_forward(x_small, params))
    assert logits_small.shape == (2, num_agents)
    assert jnp.allclose(
        logits_small, _reference_forward(x_small, params), atol=1e-2, rtol=1e-2
    )

    # 2) Batched-inference path: exercises the Pallas kernel with a bf16 input
    #    (producer-supplied), a 2-step parallel grid, and a ragged last tile.
    batch = 300
    x_big = jax.random.normal(
        k_x2, (batch, state_embedding_dim), jnp.float32
    ).astype(jnp.bfloat16)
    logits_big = policy_network_forward(x_big, params)
    logits_big = jax.block_until_ready(logits_big)

    ref_big = _reference_forward(x_big, params)
    assert logits_big.shape == (batch, num_agents)
    assert jnp.allclose(logits_big, ref_big, atol=1e-2, rtol=1e-2), (
        f"max abs err {jnp.max(jnp.abs(logits_big - ref_big))}"
    )

    # TODO(synk): select_action / _embed_state (md5 hashing, Categorical sampling)
    # are host-side Python logic, not part of the tensor forward pass.
    print("KERNEL_OK")
</pallas_src>

<mosaic_0001>
module attributes {stable_mosaic.version = 11 : i64} {
  func.func @_mlp_kernel(%arg0: i32, %arg1: memref<152x32xbf16, #tpu.memory_space<vmem>>, %arg2: memref<32x128xbf16, #tpu.memory_space<vmem>>, %arg3: memref<1x128xf32, #tpu.memory_space<vmem>>, %arg4: memref<128x128xbf16, #tpu.memory_space<vmem>>, %arg5: memref<1x128xf32, #tpu.memory_space<vmem>>, %arg6: memref<128x8xbf16, #tpu.memory_space<vmem>>, %arg7: memref<1x8xf32, #tpu.memory_space<vmem>>, %arg8: memref<152x8xf32, #tpu.memory_space<vmem>>) attributes {dimension_semantics = [#tpu.dimension_semantics<parallel>], iteration_bounds = array<i64: 2>, scalar_prefetch = 0 : i64, scratch_operands = 0 : i64, tpu.core_type = #tpu.core_type<tc>, window_params = [{transform_indices = @transform_0, window_bounds = array<i64: 152, 32>}, {pipeline_mode = #tpu.pipeline_mode<synchronous>, transform_indices = @transform_1, window_bounds = array<i64: 32, 128>}, {pipeline_mode = #tpu.pipeline_mode<synchronous>, transform_indices = @transform_2, window_bounds = array<i64: 1, 128>}, {pipeline_mode = #tpu.pipeline_mode<synchronous>, transform_indices = @transform_3, window_bounds = array<i64: 128, 128>}, {pipeline_mode = #tpu.pipeline_mode<synchronous>, transform_indices = @transform_4, window_bounds = array<i64: 1, 128>}, {pipeline_mode = #tpu.pipeline_mode<synchronous>, transform_indices = @transform_5, window_bounds = array<i64: 128, 8>}, {pipeline_mode = #tpu.pipeline_mode<synchronous>, transform_indices = @transform_6, window_bounds = array<i64: 1, 8>}, {transform_indices = @transform_7, window_bounds = array<i64: 152, 8>}]} {
    %c0 = arith.constant 0 : index
    %c0_0 = arith.constant 0 : index
    %0 = vector.load %arg1[%c0, %c0_0] : memref<152x32xbf16, #tpu.memory_space<vmem>>, vector<152x32xbf16>
    %c0_1 = arith.constant 0 : index
    %c0_2 = arith.constant 0 : index
    %1 = vector.load %arg2[%c0_1, %c0_2] : memref<32x128xbf16, #tpu.memory_space<vmem>>, vector<32x128xbf16>
    %cst = arith.constant dense<0.000000e+00> : vector<152x128xf32>
    %2 = tpu.matmul %0, %1, %cst {dimension_numbers = #tpu.dot_dimension_numbers<[1], [0], [0], [1], [0, 0, 1, 1], [], []>} : vector<152x32xbf16>, vector<32x128xbf16>, vector<152x128xf32> -> vector<152x128xf32>
    %c0_3 = arith.constant 0 : index
    %c0_4 = arith.constant 0 : index
    %3 = vector.load %arg3[%c0_3, %c0_4] : memref<1x128xf32, #tpu.memory_space<vmem>>, vector<1x128xf32>
    %4 = vector.broadcast %3 : vector<1x128xf32> to vector<152x128xf32>
    %5 = arith.addf %2, %4 : vector<152x128xf32>
    %cst_5 = arith.constant 0.000000e+00 : f32
    %6 = vector.broadcast %cst_5 : f32 to vector<152x128xf32>
    %7 = arith.maximumf %5, %6 : vector<152x128xf32>
    %8 = arith.truncf %7 : vector<152x128xf32> to vector<152x128xbf16>
    %c0_6 = arith.constant 0 : index
    %c0_7 = arith.constant 0 : index
    %9 = vector.load %arg4[%c0_6, %c0_7] : memref<128x128xbf16, #tpu.memory_space<vmem>>, vector<128x128xbf16>
    %cst_8 = arith.constant dense<0.000000e+00> : vector<152x128xf32>
    %10 = tpu.matmul %8, %9, %cst_8 {dimension_numbers = #tpu.dot_dimension_numbers<[1], [0], [0], [1], [0, 0, 1, 1], [], []>} : vector<152x128xbf16>, vector<128x128xbf16>, vector<152x128xf32> -> vector<152x128xf32>
    %c0_9 = arith.constant 0 : index
    %c0_10 = arith.constant 0 : index
    %11 = vector.load %arg5[%c0_9, %c0_10] : memref<1x128xf32, #tpu.memory_space<vmem>>, vector<1x128xf32>
    %12 = vector.broadcast %11 : vector<1x128xf32> to vector<152x128xf32>
    %13 = arith.addf %10, %12 : vector<152x128xf32>
    %cst_11 = arith.constant 0.000000e+00 : f32
    %14 = vector.broadcast %cst_11 : f32 to vector<152x128xf32>
    %15 = arith.maximumf %13, %14 : vector<152x128xf32>
    %16 = arith.truncf %15 : vector<152x128xf32> to vector<152x128xbf16>
    %c0_12 = arith.constant 0 : index
    %c0_13 = arith.constant 0 : index
    %17 = vector.load %arg6[%c0_12, %c0_13] : memref<128x8xbf16, #tpu.memory_space<vmem>>, vector<128x8xbf16>
    %cst_14 = arith.constant dense<0.000000e+00> : vector<152x8xf32>
    %18 = tpu.matmul %16, %17, %cst_14 {dimension_numbers = #tpu.dot_dimension_numbers<[1], [0], [0], [1], [0, 0, 1, 1], [], []>} : vector<152x128xbf16>, vector<128x8xbf16>, vector<152x8xf32> -> vector<152x8xf32>
    %c0_15 = arith.constant 0 : index
    %c0_16 = arith.constant 0 : index
    %19 = vector.load %arg7[%c0_15, %c0_16] : memref<1x8xf32, #tpu.memory_space<vmem>>, vector<1x8xf32>
    %20 = vector.broadcast %19 : vector<1x8xf32> to vector<152x8xf32>
    %21 = arith.addf %18, %20 : vector<152x8xf32>
    %c0_17 = arith.constant 0 : index
    %c0_18 = arith.constant 0 : index
    %22 = vector.load %arg8[%c0_17, %c0_18] : memref<152x8xf32, #tpu.memory_space<vmem>>, vector<152x8xf32>
    tpu.vector_store %arg8[%c0_17, %c0_18], %21 {strides = array<i32>} : memref<152x8xf32, #tpu.memory_space<vmem>>, vector<152x8xf32>,
    return
  }
  func.func @transform_0(%arg0: i32) -> (i32, i32) {
    %c0_i32 = arith.constant 0 : i32
    %c0_i32_0 = arith.constant 0 : i32
    return %arg0, %c0_i32 : i32, i32
  }
  func.func @transform_1(%arg0: i32) -> (i32, i32) {
    %c0_i32 = arith.constant 0 : i32
    %c0_i32_0 = arith.constant 0 : i32
    %c0_i32_1 = arith.constant 0 : i32
    return %c0_i32, %c0_i32_0 : i32, i32
  }
  func.func @transform_2(%arg0: i32) -> (i32, i32) {
    %c0_i32 = arith.constant 0 : i32
    %c0_i32_0 = arith.constant 0 : i32
    %c0_i32_1 = arith.constant 0 : i32
    return %c0_i32, %c0_i32_0 : i32, i32
  }
  func.func @transform_3(%arg0: i32) -> (i32, i32) {
    %c0_i32 = arith.constant 0 : i32
    %c0_i32_0 = arith.constant 0 : i32
    %c0_i32_1 = arith.constant 0 : i32
    return %c0_i32, %c0_i32_0 : i32, i32
  }
  func.func @transform_4(%arg0: i32) -> (i32, i32) {
    %c0_i32 = arith.constant 0 : i32
    %c0_i32_0 = arith.constant 0 : i32
    %c0_i32_1 = arith.constant 0 : i32
    return %c0_i32, %c0_i32_0 : i32, i32
  }
  func.func @transform_5(%arg0: i32) -> (i32, i32) {
    %c0_i32 = arith.constant 0 : i32
    %c0_i32_0 = arith.constant 0 : i32
    %c0_i32_1 = arith.constant 0 : i32
    return %c0_i32, %c0_i32_0 : i32, i32
  }
  func.func @transform_6(%arg0: i32) -> (i32, i32) {
    %c0_i32 = arith.constant 0 : i32
    %c0_i32_0 = arith.constant 0 : i32
    %c0_i32_1 = arith.constant 0 : i32
    return %c0_i32, %c0_i32_0 : i32, i32
  }
  func.func @transform_7(%arg0: i32) -> (i32, i32) {
    %c0_i32 = arith.constant 0 : i32
    %c0_i32_0 = arith.constant 0 : i32
    return %arg0, %c0_i32 : i32, i32
  }
}

</mosaic_0001>

<llo_original>
// kernel: tpu_custom_call.1
$region0: #{tpu_custom_call.1}
  #allocation0 [shape = 'u32[]', space=smem, size = 0x4, offset = 0x4, fixed_abs, tag = 'smem constant byte address 0x4 - core index']
  #allocation1 [shape = 'u32[72,128]{1,0:T(1,128)}', space=vmem, size = 0x9000, scoped, tag = 'internal scratch']
  %s0 = inlined_call_operand.vmem [shape: bf16[300,32], index: 0, kind: input, shape index: {}]
  %s1 = inlined_call_operand.vmem [shape: bf16[32,128], index: 1, kind: input, shape index: {}]
  %s2 = inlined_call_operand.vmem [shape: f32[1,128], index: 2, kind: input, shape index: {}]
  %s3 = inlined_call_operand.vmem [shape: bf16[128,128], index: 3, kind: input, shape index: {}]
  %s4 = inlined_call_operand.vmem [shape: f32[1,128], index: 4, kind: input, shape index: {}]
  %s5 = inlined_call_operand.vmem [shape: bf16[128,8], index: 5, kind: input, shape index: {}]
  %s6 = inlined_call_operand.vmem [shape: f32[1,8], index: 6, kind: input, shape index: {}]
  %s7 = inlined_call_operand.vmem [shape: f32[300,8], index: 7, kind: output, shape index: {}]
  %s8 = sld [smem:[#allocation0]]
  $region61: #{tpu_custom_call.1} parent=0
    _
  %s10 = ssub.s32 1, %s8
  %s11 = scalar_select 0, %s10, %s8
  loop: start=0, step=1, limit=4
  $region2: #{tpu_custom_call.1} parent=0 // loop_pre_header
    _
  $region3: #{tpu_custom_call.1} parent=0 // loop_header
    %s13 = sphi 0, %s17
    %p14 = scmp.ge.s32.totalorder %s13, 4
    %s23 = sphi 0, %s25
    %s26 = sphi 0, %s23
    %s27 = sphi 0, %s26
    %s43 = sphi 0, %s27
    %s47 = sphi 0, %s47
    %s49 = sphi 0, %s47
    %s50 = sphi 0, %s49
    %s64 = sphi 0, %s50
    %s68 = sphi 0, %s68
    %s70 = sphi 0, %s68
    %s71 = sphi 0, %s70
    %s85 = sphi 0, %s71
    %s89 = sphi 0, %s89
    %s91 = sphi 0, %s89
    %s92 = sphi 0, %s91
    %s106 = sphi 0, %s92
    %s110 = sphi 0, %s110
    %s112 = sphi 0, %s110
    %s113 = sphi 0, %s112
    %s127 = sphi 0, %s113
    %s131 = sphi 0, %s131
    %s133 = sphi 0, %s131
    %s134 = sphi 0, %s133
    %s148 = sphi 0, %s134
    %s152 = sphi 0, %s152
    %s154 = sphi 0, %s152
    %s155 = sphi 0, %s154
    %s169 = sphi 0, %s155
    %s175 = sphi 0, %s177
    %s178 = sphi 0, %s175
    %s179 = sphi 0, %s178
    %s195 = sphi 0, %s179
  $region4: #{tpu_custom_call.1} parent=0 // loop_header_branch
    %16 = sbr.rel (%p14) target = $region8
  $region5: #{tpu_custom_call.1} parent=0 // loop_body
    %s18 = ssub.s32 %s13, 1
    %s19 = ssub.s32 %s13, 2
    %s20 = sadd.s32 %s13, 1
    %s21 = ssub.s32 %s13, %s20
    %p22 = scmp.eq.s32.totalorder %s21, 0
    %s24 = sadd.s32 %s23, 1
    %s25 = scalar_select %p22, %s23, %s24
    %p28 = pneg %p22
    %p29 = scmp.eq.s32.totalorder %s13, 1
    %p30 = por %p28, %p29
    %p31 = scmp.ne.s32.totalorder %s23, %s26
    %p32 = scmp.eq.s32.totalorder %s13, 0
    %p33 = por %p31, %p32
    %p34 = scmp.ne.s32.totalorder %s23, %s26
    %p35 = scmp.eq.s32.totalorder %s18, 1
    %p36 = por %p34, %p35
    %p37 = scmp.ne.s32.totalorder %s26, %s27
    %p38 = scmp.eq.s32.totalorder %s18, 0
    %p39 = por %p37, %p38
    %p40 = scmp.ne.s32.totalorder %s26, %s27
    %p41 = scmp.eq.s32.totalorder %s19, 1
    %p42 = por %p40, %p41
    %p44 = scmp.ne.s32.totalorder %s27, %s43
    %p45 = scmp.eq.s32.totalorder %s19, 0
    %p46 = por %p44, %p45
    %s48 = sadd.s32 %s47, 1
    %p51 = scmp.eq.s32.totalorder %s13, 1
    %p52 = scmp.ne.s32.totalorder %s47, %s49
    %p53 = scmp.eq.s32.totalorder %s13, 0
    %p54 = por %p52, %p53
    %p55 = scmp.ne.s32.totalorder %s47, %s49
    %p56 = scmp.eq.s32.totalorder %s18, 1
    %p57 = por %p55, %p56
    %p58 = scmp.ne.s32.totalorder %s49, %s50
    %p59 = scmp.eq.s32.totalorder %s18, 0
    %p60 = por %p58, %p59
    %p61 = scmp.ne.s32.totalorder %s49, %s50
    %p62 = scmp.eq.s32.totalorder %s19, 1
    %p63 = por %p61, %p62
    %p65 = scmp.ne.s32.totalorder %s50, %s64
    %p66 = scmp.eq.s32.totalorder %s19, 0
    %p67 = por %p65, %p66
    %s69 = sadd.s32 %s68, 1
    %p72 = scmp.eq.s32.totalorder %s13, 1
    %p73 = scmp.ne.s32.totalorder %s68, %s70
    %p74 = scmp.eq.s32.totalorder %s13, 0
    %p75 = por %p73, %p74
    %p76 = scmp.ne.s32.totalorder %s68, %s70
    %p77 = scmp.eq.s32.totalorder %s18, 1
    %p78 = por %p76, %p77
    %p79 = scmp.ne.s32.totalorder %s70, %s71
    %p80 = scmp.eq.s32.totalorder %s18, 0
    %p81 = por %p79, %p80
    %p82 = scmp.ne.s32.totalorder %s70, %s71
    %p83 = scmp.eq.s32.totalorder %s19, 1
    %p84 = por %p82, %p83
    %p86 = scmp.ne.s32.totalorder %s71, %s85
    %p87 = scmp.eq.s32.totalorder %s19, 0
    %p88 = por %p86, %p87
    %s90 = sadd.s32 %s89, 1
    %p93 = scmp.eq.s32.totalorder %s13, 1
    %p94 = scmp.ne.s32.totalorder %s89, %s91
    %p95 = scmp.eq.s32.totalorder %s13, 0
    %p96 = por %p94, %p95
    %p97 = scmp.ne.s32.totalorder %s89, %s91
    %p98 = scmp.eq.s32.totalorder %s18, 1
    %p99 = por %p97, %p98
    %p100 = scmp.ne.s32.totalorder %s91, %s92
    %p101 = scmp.eq.s32.totalorder %s18, 0
    %p102 = por %p100, %p101
    %p103 = scmp.ne.s32.totalorder %s91, %s92
    %p104 = scmp.eq.s32.totalorder %s19, 1
    %p105 = por %p103, %p104
    %p107 = scmp.ne.s32.totalorder %s92, %s106
    %p108 = scmp.eq.s32.totalorder %s19, 0
    %p109 = por %p107, %p108
    %s111 = sadd.s32 %s110, 1
    %p114 = scmp.eq.s32.totalorder %s13, 1
    %p115 = scmp.ne.s32.totalorder %s110, %s112
    %p116 = scmp.eq.s32.totalorder %s13, 0
    %p117 = por %p115, %p116
    %p118 = scmp.ne.s32.totalorder %s110, %s112
    %p119 = scmp.eq.s32.totalorder %s18, 1
    %p120 = por %p118, %p119
    %p121 = scmp.ne.s32.totalorder %s112, %s113
    %p122 = scmp.eq.s32.totalorder %s18, 0
    %p123 = por %p121, %p122
    %p124 = scmp.ne.s32.totalorder %s112, %s113
    %p125 = scmp.eq.s32.totalorder %s19, 1
    %p126 = por %p124, %p125
    %p128 = scmp.ne.s32.totalorder %s113, %s127
    %p129 = scmp.eq.s32.totalorder %s19, 0
    %p130 = por %p128, %p129
    %s132 = sadd.s32 %s131, 1
    %p135 = scmp.eq.s32.totalorder %s13, 1
    %p136 = scmp.ne.s32.totalorder %s131, %s133
    %p137 = scmp.eq.s32.totalorder %s13, 0
    %p138 = por %p136, %p137
    %p139 = scmp.ne.s32.totalorder %s131, %s133
    %p140 = scmp.eq.s32.totalorder %s18, 1
    %p141 = por %p139, %p140
    %p142 = scmp.ne.s32.totalorder %s133, %s134
    %p143 = scmp.eq.s32.totalorder %s18, 0
    %p144 = por %p142, %p143
    %p145 = scmp.ne.s32.totalorder %s133, %s134
    %p146 = scmp.eq.s32.totalorder %s19, 1
    %p147 = por %p145, %p146
    %p149 = scmp.ne.s32.totalorder %s134, %s148
    %p150 = scmp.eq.s32.totalorder %s19, 0
    %p151 = por %p149, %p150
    %s153 = sadd.s32 %s152, 1
    %p156 = scmp.eq.s32.totalorder %s13, 1
    %p157 = scmp.ne.s32.totalorder %s152, %s154
    %p158 = scmp.eq.s32.totalorder %s13, 0
    %p159 = por %p157, %p158
    %p160 = scmp.ne.s32.totalorder %s152, %s154
    %p161 = scmp.eq.s32.totalorder %s18, 1
    %p162 = por %p160, %p161
    %p163 = scmp.ne.s32.totalorder %s154, %s155
    %p164 = scmp.eq.s32.totalorder %s18, 0
    %p165 = por %p163, %p164
    %p166 = scmp.ne.s32.totalorder %s154, %s155
    %p167 = scmp.eq.s32.totalorder %s19, 1
    %p168 = por %p166, %p167
    %p170 = scmp.ne.s32.totalorder %s155, %s169
    %p171 = scmp.eq.s32.totalorder %s19, 0
    %p172 = por %p170, %p171
    %s173 = ssub.s32 %s13, %s20
    %p174 = scmp.eq.s32.totalorder %s173, 0
    %s176 = sadd.s32 %s175, 1
    %s177 = scalar_select %p174, %s175, %s176
    %p180 = pneg %p174
    %p181 = scmp.eq.s32.totalorder %s13, 1
    %p182 = por %p180, %p181
    %p183 = scmp.ne.s32.totalorder %s175, %s178
    %p184 = scmp.eq.s32.totalorder %s13, 0
    %p185 = por %p183, %p184
    %p186 = scmp.ne.s32.totalorder %s175, %s178
    %p187 = scmp.eq.s32.totalorder %s18, 1
    %p188 = por %p186, %p187
    %p189 = scmp.ne.s32.totalorder %s178, %s179
    %p190 = scmp.eq.s32.totalorder %s18, 0
    %p191 = por %p189, %p190
    %p192 = scmp.ne.s32.totalorder %s178, %s179
    %p193 = scmp.eq.s32.totalorder %s19, 1
    %p194 = por %p192, %p193
    %p196 = scmp.ne.s32.totalorder %s179, %s195
    %p197 = scmp.eq.s32.totalorder %s19, 0
    %p198 = por %p196, %p197
    %p199 = scmp.le.s32.totalorder 1, %s13
    %p200 = scmp.lt.s32.totalorder %s13, 3
    %p201 = pnand %p199, %p200
    %p202 = pneg %p201
    // Predicated region
    $region9: #{tpu_custom_call.1} parent=5 // pred_check
      _
    $region10: #{tpu_custom_call.1} parent=5 // pred_check_branch
      %204 = sbr.rel (%p201) target = $region12
    $region11: #{tpu_custom_call.1} parent=5 // pred_region
      %s205 = ssub.s32 %s13, 1
      // Predicated region
      $region13: #{tpu_custom_call.1} parent=11 // pred_check
        %p206 = pneg %p60
      $region14: #{tpu_custom_call.1} parent=11 // pred_check_branch
        %208 = sbr.rel (%p206) target = $region16
      $region15: #{tpu_custom_call.1} parent=11 // pred_region
        _
      $region16: #{tpu_custom_call.1} parent=11 // pred_fallthru
        _
      // Predicated region
      $region17: #{tpu_custom_call.1} parent=11 // pred_check
        %p209 = pneg %p81
      $region18: #{tpu_custom_call.1} parent=11 // pred_check_branch
        %211 = sbr.rel (%p209) target = $region20
      $region19: #{tpu_custom_call.1} parent=11 // pred_region
        _
      $region20: #{tpu_custom_call.1} parent=11 // pred_fallthru
        _
      // Predicated region
      $region21: #{tpu_custom_call.1} parent=11 // pred_check
        %p212 = pneg %p102
      $region22: #{tpu_custom_call.1} parent=11 // pred_check_branch
        %214 = sbr.rel (%p212) target = $region24
      $region23: #{tpu_custom_call.1} parent=11 // pred_region
        _
      $region24: #{tpu_custom_call.1} parent=11 // pred_fallthru
        _
      // Predicated region
      $region25: #{tpu_custom_call.1} parent=11 // pred_check
        %p215 = pneg %p123
      $region26: #{tpu_custom_call.1} parent=11 // pred_check_branch
        %217 = sbr.rel (%p215) target = $region28
      $region27: #{tpu_custom_call.1} parent=11 // pred_region
        _
      $region28: #{tpu_custom_call.1} parent=11 // pred_fallthru
        _
      // Predicated region
      $region29: #{tpu_custom_call.1} parent=11 // pred_check
        %p218 = pneg %p144
      $region30: #{tpu_custom_call.1} parent=11 // pred_check_branch
        %220 = sbr.rel (%p218) target = $region32
      $region31: #{tpu_custom_call.1} parent=11 // pred_region
        _
      $region32: #{tpu_custom_call.1} parent=11 // pred_fallthru
        _
      // Predicated region
      $region33: #{tpu_custom_call.1} parent=11 // pred_check
        %p221 = pneg %p165
      $region34: #{tpu_custom_call.1} parent=11 // pred_check_branch
        %223 = sbr.rel (%p221) target = $region36
      $region35: #{tpu_custom_call.1} parent=11 // pred_region
        _
      $region36: #{tpu_custom_call.1} parent=11 // pred_fallthru
        _
    $region12: #{tpu_custom_call.1} parent=5 // pred_fallthru
      _
    %p224 = scmp.lt.s32.totalorder %s13, 2
    // Predicated region
    $region37: #{tpu_custom_call.1} parent=5 // pred_check
      %p225 = pneg %p224
    $region38: #{tpu_custom_call.1} parent=5 // pred_check_branch
      %227 = sbr.rel (%p225) target = $region40
    $region39: #{tpu_custom_call.1} parent=5 // pred_region
      // Predicated region
      $region41: #{tpu_custom_call.1} parent=39 // pred_check
        %p228 = pneg %p33
      $region42: #{tpu_custom_call.1} parent=39 // pred_check_branch
        %230 = sbr.rel (%p228) target = $region44
      $region43: #{tpu_custom_call.1} parent=39 // pred_region
        %s231 = smul.u32 19, %s13
        %p232 = scmp.lt.s32.totalorder %s231, 37
        %s233 = scalar_select %p232, %s231, 37
        %s234 = smul.addr %s233, 4
        %s235 = scalar_lea.vmem %s0, %s234
        %s236 = smul.u32 19, %s13
      $region44: #{tpu_custom_call.1} parent=39 // pred_fallthru
        _
    $region40: #{tpu_custom_call.1} parent=5 // pred_fallthru
      _
    %p237 = scmp.le.s32.totalorder 1, %s13
    %p238 = scmp.lt.s32.totalorder %s13, 3
    %p239 = pnand %p237, %p238
    %p240 = pneg %p239
    // Predicated region
    $region45: #{tpu_custom_call.1} parent=5 // pred_check
      _
    $region46: #{tpu_custom_call.1} parent=5 // pred_check_branch
      %242 = sbr.rel (%p239) target = $region48
    $region47: #{tpu_custom_call.1} parent=5 // pred_region
      %s243 = ssub.s32 %s13, 1
      %s244 = smul.u32 19, %s18
      %p245 = scmp.lt.s32.totalorder %s244, 37
      %s246 = scalar_select %p245, %s244, 37
      %s247 = smul.addr %s246, 4
      %s248 = scalar_lea.vmem %s0, %s247
      %p249 = pneg %p39
      %p250 = pneg %p36
      %p251 = pneg %p60
      %p252 = pneg %p57
      %p253 = pneg %p81
      %p254 = pneg %p78
      %p255 = pneg %p102
      %p256 = pneg %p99
      %p257 = pneg %p123
      %p258 = pneg %p120
      %p259 = pneg %p144
      %p260 = pneg %p141
      %p261 = pneg %p165
      %p262 = pneg %p162
      %p263 = pneg %p191
      %p264 = pneg %p188
      %s265 = smul.u32 19, %s18
      %p266 = scmp.lt.s32.totalorder %s265, 37
      %s267 = scalar_select %p266, %s265, 37
      %s268 = smul.addr %s267, 8
      %s269 = scalar_lea.vmem %s7, %s268
      %s270 = smul.u32 19, %s18
      %p271 = scmp.lt.s32.totalorder %s270, 37
      %s272 = scalar_select %p271, %s270, 37
      %s273 = smul.addr %s272, 4
      %s274 = scalar_lea.vmem %s0, %s273
      %s275 = smul.u32 19, %s18
      %s276 = smul.u32 19, %s18
      %p277 = scmp.lt.s32.totalorder %s276, 37
      %s278 = scalar_select %p277, %s276, 37
      %s279 = smul.addr %s278, 8
      %s280 = scalar_lea.vmem %s7, %s279
      %s281 = smul.u32 19, %s18
      %v283 = vld [vmem:[%s274] sm:$0xf]
      %v284 = vld [vmem:[%s274 + $0x4] sm:$0xf]
      %v285 = vld [vmem:[%s274 + $0x8] sm:$0xf]
      %v286 = vld [vmem:[%s274 + $0xc] sm:$0xf]
      %v287 = vld [vmem:[%s274 + $0x10] sm:$0xf]
      %v288 = vld [vmem:[%s274 + $0x14] sm:$0xf]
      %v289 = vld [vmem:[%s274 + $0x18] sm:$0xf]
      %v290 = vld [vmem:[%s274 + $0x1c] sm:$0xf]
      %v291 = vld [vmem:[%s274 + $0x20] sm:$0xf]
      %v292 = vld [vmem:[%s274 + $0x24] sm:$0xf]
      %v293 = vld [vmem:[%s274 + $0x28] sm:$0xf]
      %v294 = vld [vmem:[%s274 + $0x2c] sm:$0xf]
      %v295 = vld [vmem:[%s274 + $0x30] sm:$0xf]
      %v296 = vld [vmem:[%s274 + $0x34] sm:$0xf]
      %v297 = vld [vmem:[%s274 + $0x38] sm:$0xf]
      %v298 = vld [vmem:[%s274 + $0x3c] sm:$0xf]
      %v299 = vld [vmem:[%s274 + $0x40] sm:$0xf]
      %v300 = vld [vmem:[%s274 + $0x44] sm:$0xf]
      %v301 = vld [vmem:[%s274 + $0x48] sm:$0xf]
      %v302 = vld [vmem:[%s1] sm:$0xf]
      %v303 = vld [vmem:[%s1 + $0x4] sm:$0xf]
      %v304 = vld [vmem:[%s1 + $0x8] sm:$0xf]
      %v305 = vld [vmem:[%s1 + $0xc] sm:$0xf]
      %v306 = vld [vmem:[%s2] sm:$0x1]
      %v308 = vperm.slane %v306, 0
      %v329 = vunpack.c.l.b16 %v283
      %v330 = vunpack.c.l.b16 %v284
      %v331 = vunpack.c.l.b16 %v285
      %v332 = vunpack.c.l.b16 %v286
      %v333 = vunpack.c.l.b16 %v287
      %v334 = vunpack.c.l.b16 %v288
      %v335 = vunpack.c.l.b16 %v289
      %v336 = vunpack.c.l.b16 %v290
      %v337 = vunpack.c.l.b16 %v291
      %v338 = vunpack.c.l.b16 %v292
      %v339 = vunpack.c.l.b16 %v293
      %v340 = vunpack.c.l.b16 %v294
      %v341 = vunpack.c.l.b16 %v295
      %v342 = vunpack.c.l.b16 %v296
      %v343 = vunpack.c.l.b16 %v297
      %v344 = vunpack.c.l.b16 %v298
      %v345 = vunpack.c.l.b16 %v299
      %v346 = vunpack.c.l.b16 %v300
      %v347 = vunpack.c.l.b16 %v301
      %v348 = vpack.c.b16 %v330, %v329
      %v349 = vpack.c.b16 %v332, %v331
      %v350 = vpack.c.b16 %v334, %v333
      %v351 = vpack.c.b16 %v336, %v335
      %v352 = vpack.c.b16 %v338, %v337
      %v353 = vpack.c.b16 %v340, %v339
      %v354 = vpack.c.b16 %v342, %v341
      %v355 = vpack.c.b16 %v344, %v343
      %v356 = vpack.c.b16 %v346, %v345
      %v357 = vpack.c.b16 %v347, %v347
      %v362 = vunpack.c.l.b16 %v302
      %v363 = vunpack.c.l.b16 %v303
      %v364 = vunpack.c.l.b16 %v304
      %v365 = vunpack.c.l.b16 %v305
      %v366 = vpack.c.b16 %v363, %v362
      %v367 = vpack.c.b16 %v365, %v364
      %vm370 = vcmask 261120
      %v372 = vsel %vm370, %v348, 0
      %v375 = vsel %vm370, %v349, 0
      %v378 = vsel %vm370, %v350, 0
      %v381 = vsel %vm370, %v351, 0
      %v384 = vsel %vm370, %v352, 0
      %v387 = vsel %vm370, %v353, 0
      %v390 = vsel %vm370, %v354, 0
      %v393 = vsel %vm370, %v355, 0
      %v396 = vsel %vm370, %v356, 0
      %v399 = vsel %vm370, %v357, 0
      %401 = vmatpush.bf16.msra.mxu0 0
      %402 = vmatpush.bf16.msra.mxu0 0
      %403 = vmatpush.bf16.msra.mxu0 0
      %404 = vmatpush.bf16.msra.mxu0 0
      %405 = vmatpush.bf16.msra.mxu0 0
      %406 = vmatpush.bf16.msra.mxu0 0
      %407 = vmatpush.bf16.msra.mxu0 %v367
      %408 = vmatpush.bf16.msra.mxu0 %v366
      %409 = vmatmul.bf16.gmra.mxu0 %v372
      %v410 = vpop.f32.mrf.mxu0
      %v411 = vadd.f32 %v308, %v410
      %v412 = vpop.f32.mrf.mxu0
      %v413 = vadd.f32 %v308, %v412
      %414 = vmatmul.bf16.gmra.mxu0 %v375
      %v415 = vpop.f32.mrf.mxu0
      %v416 = vadd.f32 %v308, %v415
      %v417 = vpop.f32.mrf.mxu0
      %v418 = vadd.f32 %v308, %v417
      %419 = vmatmul.bf16.gmra.mxu0 %v378
      %v420 = vpop.f32.mrf.mxu0
      %v421 = vadd.f32 %v308, %v420
      %v422 = vpop.f32.mrf.mxu0
      %v423 = vadd.f32 %v308, %v422
      %424 = vmatmul.bf16.gmra.mxu0 %v381
      %v425 = vpop.f32.mrf.mxu0
      %v426 = vadd.f32 %v308, %v425
      %v427 = vpop.f32.mrf.mxu0
      %v428 = vadd.f32 %v308, %v427
      %429 = vmatmul.bf16.gmra.mxu0 %v384
      %v430 = vpop.f32.mrf.mxu0
      %v431 = vadd.f32 %v308, %v430
      %v432 = vpop.f32.mrf.mxu0
      %v433 = vadd.f32 %v308, %v432
      %434 = vmatmul.bf16.gmra.mxu0 %v387
      %v435 = vpop.f32.mrf.mxu0
      %v436 = vadd.f32 %v308, %v435
      %v437 = vpop.f32.mrf.mxu0
      %v438 = vadd.f32 %v308, %v437
      %439 = vmatmul.bf16.gmra.mxu0 %v390
      %v440 = vpop.f32.mrf.mxu0
      %v441 = vadd.f32 %v308, %v440
      %v442 = vpop.f32.mrf.mxu0
      %v443 = vadd.f32 %v308, %v442
      %444 = vmatmul.bf16.gmra.mxu0 %v393
      %v445 = vpop.f32.mrf.mxu0
      %v446 = vadd.f32 %v308, %v445
      %v447 = vpop.f32.mrf.mxu0
      %v448 = vadd.f32 %v308, %v447
      %449 = vmatmul.bf16.gmra.mxu0 %v396
      %v450 = vpop.f32.mrf.mxu0
      %v451 = vadd.f32 %v308, %v450
      %v452 = vpop.f32.mrf.mxu0
      %v453 = vadd.f32 %v308, %v452
      %454 = vmatmul.bf16.gmra.mxu0 %v399
      %v455 = vpop.f32.mrf.mxu0
      %v456 = vadd.f32 %v308, %v455
      %v457 = vpop.f32.mrf.mxu0
      %458 = vdwg.mxu0
      %v459 = vmax.f32 %v411, 0.0
      %v460 = vmax.f32 %v413, 0.0
      %v461 = vmax.f32 %v416, 0.0
      %v462 = vmax.f32 %v418, 0.0
      %v463 = vmax.f32 %v421, 0.0
      %v464 = vmax.f32 %v423, 0.0
      %v465 = vmax.f32 %v426, 0.0
      %v466 = vmax.f32 %v428, 0.0
      %v467 = vmax.f32 %v431, 0.0
      %v468 = vmax.f32 %v433, 0.0
      %v469 = vmax.f32 %v436, 0.0
      %v470 = vmax.f32 %v438, 0.0
      %v471 = vmax.f32 %v441, 0.0
      %v472 = vmax.f32 %v443, 0.0
      %v473 = vmax.f32 %v446, 0.0
      %v474 = vmax.f32 %v448, 0.0
      %v475 = vmax.f32 %v451, 0.0
      %v476 = vmax.f32 %v453, 0.0
      %v477 = vmax.f32 %v456, 0.0
      %v478 = vpack.c.bf16 %v460, %v459
      %v479 = vpack.c.bf16 %v462, %v461
      %v480 = vpack.c.bf16 %v464, %v463
      %v481 = vpack.c.bf16 %v466, %v465
      %v482 = vpack.c.bf16 %v468, %v467
      %v483 = vpack.c.bf16 %v470, %v469
      %v484 = vpack.c.bf16 %v472, %v471
      %v485 = vpack.c.bf16 %v474, %v473
      %v486 = vpack.c.bf16 %v476, %v475
      %v487 = vpack.c.bf16 %v477, %v477
      %v488 = vld [vmem:[%s3] sm:$0xf]
      %v489 = vld [vmem:[%s3 + $0x4] sm:$0xf]
      %v490 = vld [vmem:[%s3 + $0x8] sm:$0xf]
      %v491 = vld [vmem:[%s3 + $0xc] sm:$0xf]
      %v492 = vld [vmem:[%s3 + $0x10] sm:$0xf]
      %v493 = vld [vmem:[%s3 + $0x14] sm:$0xf]
      %v494 = vld [vmem:[%s3 + $0x18] sm:$0xf]
      %v495 = vld [vmem:[%s3 + $0x1c] sm:$0xf]
      %v496 = vld [vmem:[%s3 + $0x20] sm:$0xf]
      %v497 = vld [vmem:[%s3 + $0x24] sm:$0xf]
      %v498 = vld [vmem:[%s3 + $0x28] sm:$0xf]
      %v499 = vld [vmem:[%s3 + $0x2c] sm:$0xf]
      %v500 = vld [vmem:[%s3 + $0x30] sm:$0xf]
      %v501 = vld [vmem:[%s3 + $0x34] sm:$0xf]
      %v502 = vld [vmem:[%s3 + $0x38] sm:$0xf]
      %v503 = vld [vmem:[%s3 + $0x3c] sm:$0xf]
      %v504 = vld [vmem:[%s4] sm:$0x1]
      %v506 = vperm.slane %v504, 0
      %v524 = vunpack.c.l.b16 %v488
      %v525 = vunpack.c.l.b16 %v489
      %v526 = vunpack.c.l.b16 %v490
      %v527 = vunpack.c.l.b16 %v491
      %v528 = vunpack.c.l.b16 %v492
      %v529 = vunpack.c.l.b16 %v493
      %v530 = vunpack.c.l.b16 %v494
      %v531 = vunpack.c.l.b16 %v495
      %v532 = vunpack.c.l.b16 %v496
      %v533 = vunpack.c.l.b16 %v497
      %v534 = vunpack.c.l.b16 %v498
      %v535 = vunpack.c.l.b16 %v499
      %v536 = vunpack.c.l.b16 %v500
      %v537 = vunpack.c.l.b16 %v501
      %v538 = vunpack.c.l.b16 %v502
      %v539 = vunpack.c.l.b16 %v503
      %v540 = vpack.c.b16 %v525, %v524
      %v541 = vpack.c.b16 %v527, %v526
      %v542 = vpack.c.b16 %v529, %v528
      %v543 = vpack.c.b16 %v531, %v530
      %v544 = vpack.c.b16 %v533, %v532
      %v545 = vpack.c.b16 %v535, %v534
      %v546 = vpack.c.b16 %v537, %v536
      %v547 = vpack.c.b16 %v539, %v538
      %556 = vmatpush.bf16.msra.mxu0 %v547
      %557 = vmatpush.bf16.msra.mxu0 %v546
      %558 = vmatpush.bf16.msra.mxu0 %v545
      %559 = vmatpush.bf16.msra.mxu0 %v544
      %560 = vmatpush.bf16.msra.mxu0 %v543
      %561 = vmatpush.bf16.msra.mxu0 %v542
      %562 = vmatpush.bf16.msra.mxu0 %v541
      %563 = vmatpush.bf16.msra.mxu0 %v540
      %564 = vmatmul.bf16.gmra.mxu0 %v478
      %v565 = vpop.f32.mrf.mxu0
      %v566 = vadd.f32 %v506, %v565
      %v567 = vpop.f32.mrf.mxu0
      %v568 = vadd.f32 %v506, %v567
      %569 = vmatmul.bf16.gmra.mxu0 %v479
      %v570 = vpop.f32.mrf.mxu0
      %v571 = vadd.f32 %v506, %v570
      %v572 = vpop.f32.mrf.mxu0
      %v573 = vadd.f32 %v506, %v572
      %574 = vmatmul.bf16.gmra.mxu0 %v480
      %v575 = vpop.f32.mrf.mxu0
      %v576 = vadd.f32 %v506, %v575
      %v577 = vpop.f32.mrf.mxu0
      %v578 = vadd.f32 %v506, %v577
      %579 = vmatmul.bf16.gmra.mxu0 %v481
      %v580 = vpop.f32.mrf.mxu0
      %v581 = vadd.f32 %v506, %v580
      %v582 = vpop.f32.mrf.mxu0
      %v583 = vadd.f32 %v506, %v582
      %584 = vmatmul.bf16.gmra.mxu0 %v482
      %v585 = vpop.f32.mrf.mxu0
      %v586 = vadd.f32 %v506, %v585
      %v587 = vpop.f32.mrf.mxu0
      %v588 = vadd.f32 %v506, %v587
      %589 = vmatmul.bf16.gmra.mxu0 %v483
      %v590 = vpop.f32.mrf.mxu0
      %v591 = vadd.f32 %v506, %v590
      %v592 = vpop.f32.mrf.mxu0
      %v593 = vadd.f32 %v506, %v592
      %594 = vmatmul.bf16.gmra.mxu0 %v484
      %v595 = vpop.f32.mrf.mxu0
      %v596 = vadd.f32 %v506, %v595
      %v597 = vpop.f32.mrf.mxu0
      %v598 = vadd.f32 %v506, %v597
      %599 = vmatmul.bf16.gmra.mxu0 %v485
      %v600 = vpop.f32.mrf.mxu0
      %v601 = vadd.f32 %v506, %v600
      %v602 = vpop.f32.mrf.mxu0
      %v603 = vadd.f32 %v506, %v602
      %604 = vmatmul.bf16.gmra.mxu0 %v486
      %v605 = vpop.f32.mrf.mxu0
      %v606 = vadd.f32 %v506, %v605
      %v607 = vpop.f32.mrf.mxu0
      %v608 = vadd.f32 %v506, %v607
      %609 = vmatmul.bf16.gmra.mxu0 %v487
      %v610 = vpop.f32.mrf.mxu0
      %v611 = vadd.f32 %v506, %v610
      %v612 = vpop.f32.mrf.mxu0
      %613 = vdwg.mxu0
      %v614 = vmax.f32 %v566, 0.0
      %v615 = vmax.f32 %v568, 0.0
      %v616 = vmax.f32 %v571, 0.0
      %v617 = vmax.f32 %v573, 0.0
      %v618 = vmax.f32 %v576, 0.0
      %v619 = vmax.f32 %v578, 0.0
      %v620 = vmax.f32 %v581, 0.0
      %v621 = vmax.f32 %v583, 0.0
      %v622 = vmax.f32 %v586, 0.0
      %v623 = vmax.f32 %v588, 0.0
      %v624 = vmax.f32 %v591, 0.0
      %v625 = vmax.f32 %v593, 0.0
      %v626 = vmax.f32 %v596, 0.0
      %v627 = vmax.f32 %v598, 0.0
      %v628 = vmax.f32 %v601, 0.0
      %v629 = vmax.f32 %v603, 0.0
      %v630 = vmax.f32 %v606, 0.0
      %v631 = vmax.f32 %v608, 0.0
      %v632 = vmax.f32 %v611, 0.0
      %v633 = vpack.c.bf16 %v615, %v614
      %v634 = vpack.c.bf16 %v617, %v616
      %v635 = vpack.c.bf16 %v619, %v618
      %v636 = vpack.c.bf16 %v621, %v620
      %v637 = vpack.c.bf16 %v623, %v622
      %v638 = vpack.c.bf16 %v625, %v624
      %v639 = vpack.c.bf16 %v627, %v626
      %v640 = vpack.c.bf16 %v629, %v628
      %v641 = vpack.c.bf16 %v631, %v630
      %v642 = vpack.c.bf16 %v632, %v632
      %v643 = vld [vmem:[%s5] sm:$0xf]
      %v644 = vld [vmem:[%s5 + $0x4] sm:$0xf]
      %v645 = vld [vmem:[%s5 + $0x8] sm:$0xf]
      %v646 = vld [vmem:[%s5 + $0xc] sm:$0xf]
      %v647 = vld [vmem:[%s5 + $0x10] sm:$0xf]
      %v648 = vld [vmem:[%s5 + $0x14] sm:$0xf]
      %v649 = vld [vmem:[%s5 + $0x18] sm:$0xf]
      %v650 = vld [vmem:[%s5 + $0x1c] sm:$0xf]
      %v651 = vld [vmem:[%s5 + $0x20] sm:$0xf]
      %v652 = vld [vmem:[%s5 + $0x24] sm:$0xf]
      %v653 = vld [vmem:[%s5 + $0x28] sm:$0xf]
      %v654 = vld [vmem:[%s5 + $0x2c] sm:$0xf]
      %v655 = vld [vmem:[%s5 + $0x30] sm:$0xf]
      %v656 = vld [vmem:[%s5 + $0x34] sm:$0xf]
      %v657 = vld [vmem:[%s5 + $0x38] sm:$0xf]
      %v658 = vld [vmem:[%s5 + $0x3c] sm:$0xf]
      %v659 = vld [vmem:[%s6] sm:$0x1]
      %v661 = vperm.slane %v659, 0
      %v679 = vunpack.c.l.b16 %v643
      %v680 = vunpack.c.l.b16 %v644
      %v681 = vunpack.c.l.b16 %v645
      %v682 = vunpack.c.l.b16 %v646
      %v683 = vunpack.c.l.b16 %v647
      %v684 = vunpack.c.l.b16 %v648
      %v685 = vunpack.c.l.b16 %v649
      %v686 = vunpack.c.l.b16 %v650
      %v687 = vunpack.c.l.b16 %v651
      %v688 = vunpack.c.l.b16 %v652
      %v689 = vunpack.c.l.b16 %v653
      %v690 = vunpack.c.l.b16 %v654
      %v691 = vunpack.c.l.b16 %v655
      %v692 = vunpack.c.l.b16 %v656
      %v693 = vunpack.c.l.b16 %v657
      %v694 = vunpack.c.l.b16 %v658
      %v695 = vpack.c.b16 %v680, %v679
      %v696 = vpack.c.b16 %v682, %v681
      %v697 = vpack.c.b16 %v684, %v683
      %v698 = vpack.c.b16 %v686, %v685
      %v699 = vpack.c.b16 %v688, %v687
      %v700 = vpack.c.b16 %v690, %v689
      %v701 = vpack.c.b16 %v692, %v691
      %v702 = vpack.c.b16 %v694, %v693
      %711 = vmatpush.bf16.msra.mxu0 %v702
      %712 = vmatpush.bf16.msra.mxu0 %v701
      %713 = vmatpush.bf16.msra.mxu0 %v700
      %714 = vmatpush.bf16.msra.mxu0 %v699
      %715 = vmatpush.bf16.msra.mxu0 %v698
      %716 = vmatpush.bf16.msra.mxu0 %v697
      %717 = vmatpush.bf16.msra.mxu0 %v696
      %718 = vmatpush.bf16.msra.mxu0 %v695
      %719 = vmatmul.bf16.gmra.mxu0 %v633
      %v720 = vpop.f32.mrf.mxu0
      %v721 = vadd.f32 %v661, %v720
      %v722 = vpop.f32.mrf.mxu0
      %v723 = vadd.f32 %v661, %v722
      %724 = vmatmul.bf16.gmra.mxu0 %v634
      %v725 = vpop.f32.mrf.mxu0
      %v726 = vadd.f32 %v661, %v725
      %v727 = vpop.f32.mrf.mxu0
      %v728 = vadd.f32 %v661, %v727
      %729 = vmatmul.bf16.gmra.mxu0 %v635
      %v730 = vpop.f32.mrf.mxu0
      %v731 = vadd.f32 %v661, %v730
      %v732 = vpop.f32.mrf.mxu0
      %v733 = vadd.f32 %v661, %v732
      %734 = vmatmul.bf16.gmra.mxu0 %v636
      %v735 = vpop.f32.mrf.mxu0
      %v736 = vadd.f32 %v661, %v735
      %v737 = vpop.f32.mrf.mxu0
      %v738 = vadd.f32 %v661, %v737
      %739 = vmatmul.bf16.gmra.mxu0 %v637
      %v740 = vpop.f32.mrf.mxu0
      %v741 = vadd.f32 %v661, %v740
      %v742 = vpop.f32.mrf.mxu0
      %v743 = vadd.f32 %v661, %v742
      %744 = vmatmul.bf16.gmra.mxu0 %v638
      %v745 = vpop.f32.mrf.mxu0
      %v746 = vadd.f32 %v661, %v745
      %v747 = vpop.f32.mrf.mxu0
      %v748 = vadd.f32 %v661, %v747
      %749 = vmatmul.bf16.gmra.mxu0 %v639
      %v750 = vpop.f32.mrf.mxu0
      %v751 = vadd.f32 %v661, %v750
      %v752 = vpop.f32.mrf.mxu0
      %v753 = vadd.f32 %v661, %v752
      %754 = vmatmul.bf16.gmra.mxu0 %v640
      %v755 = vpop.f32.mrf.mxu0
      %v756 = vadd.f32 %v661, %v755
      %v757 = vpop.f32.mrf.mxu0
      %v758 = vadd.f32 %v661, %v757
      %759 = vmatmul.bf16.gmra.mxu0 %v641
      %v760 = vpop.f32.mrf.mxu0
      %v761 = vadd.f32 %v661, %v760
      %v762 = vpop.f32.mrf.mxu0
      %v763 = vadd.f32 %v661, %v762
      %764 = vmatmul.bf16.gmra.mxu0 %v642
      %v765 = vpop.f32.mrf.mxu0
      %v766 = vadd.f32 %v661, %v765
      %v767 = vpop.f32.mrf.mxu0
      %768 = vdwg.mxu0
      %vm769 = vcmask 64512
      %770 = vst.msk [vmem:[%s280] sm:$0xff] %vm769, %v721
      %771 = vst.msk [vmem:[%s280 + $0x8] sm:$0xff] %vm769, %v723
      %772 = vst.msk [vmem:[%s280 + $0x10] sm:$0xff] %vm769, %v726
      %773 = vst.msk [vmem:[%s280 + $0x18] sm:$0xff] %vm769, %v728
      %774 = vst.msk [vmem:[%s280 + $0x20] sm:$0xff] %vm769, %v731
      %775 = vst.msk [vmem:[%s280 + $0x28] sm:$0xff] %vm769, %v733
      %776 = vst.msk [vmem:[%s280 + $0x30] sm:$0xff] %vm769, %v736
      %777 = vst.msk [vmem:[%s280 + $0x38] sm:$0xff] %vm769, %v738
      %778 = vst.msk [vmem:[%s280 + $0x40] sm:$0xff] %vm769, %v741
      %779 = vst.msk [vmem:[%s280 + $0x48] sm:$0xff] %vm769, %v743
      %780 = vst.msk [vmem:[%s280 + $0x50] sm:$0xff] %vm769, %v746
      %781 = vst.msk [vmem:[%s280 + $0x58] sm:$0xff] %vm769, %v748
      %782 = vst.msk [vmem:[%s280 + $0x60] sm:$0xff] %vm769, %v751
      %783 = vst.msk [vmem:[%s280 + $0x68] sm:$0xff] %vm769, %v753
      %784 = vst.msk [vmem:[%s280 + $0x70] sm:$0xff] %vm769, %v756
      %785 = vst.msk [vmem:[%s280 + $0x78] sm:$0xff] %vm769, %v758
      %786 = vst.msk [vmem:[%s280 + $0x80] sm:$0xff] %vm769, %v761
      %787 = vst.msk [vmem:[%s280 + $0x88] sm:$0xff] %vm769, %v763
      %788 = vst.msk [vmem:[%s280 + $0x90] sm:$0xff] %vm769, %v766
      %s789 = smul.u32 19, %s18
      %p790 = scmp.lt.s32.totalorder %s789, 37
      %s791 = scalar_select %p790, %s789, 37
      %s792 = smul.addr %s791, 8
      %s793 = scalar_lea.vmem %s7, %s792
      // Predicated region
      $region49: #{tpu_custom_call.1} parent=47 // pred_check
        %p794 = pneg %p188
      $region50: #{tpu_custom_call.1} parent=47 // pred_check_branch
        %796 = sbr.rel (%p794) target = $region52
      $region51: #{tpu_custom_call.1} parent=47 // pred_region
        %s797 = smul.u32 19, %s18
      $region52: #{tpu_custom_call.1} parent=47 // pred_fallthru
        _
    $region48: #{tpu_custom_call.1} parent=5 // pred_fallthru
      _
    %p798 = scmp.le.s32.totalorder 2, %s13
    // Predicated region
    $region53: #{tpu_custom_call.1} parent=5 // pred_check
      %p799 = pneg %p798
    $region54: #{tpu_custom_call.1} parent=5 // pred_check_branch
      %801 = sbr.rel (%p799) target = $region56
    $region55: #{tpu_custom_call.1} parent=5 // pred_region
      %s802 = ssub.s32 %s13, 2
      // Predicated region
      $region57: #{tpu_custom_call.1} parent=55 // pred_check
        %p803 = pneg %p194
      $region58: #{tpu_custom_call.1} parent=55 // pred_check_branch
        %805 = sbr.rel (%p803) target = $region60
      $region59: #{tpu_custom_call.1} parent=55 // pred_region
        %s806 = smul.u32 19, %s19
        %p807 = scmp.lt.s32.totalorder %s806, 37
        %s808 = scalar_select %p807, %s806, 37
        %s809 = smul.addr %s808, 8
        %s810 = scalar_lea.vmem %s7, %s809
      $region60: #{tpu_custom_call.1} parent=55 // pred_fallthru
        _
    $region56: #{tpu_custom_call.1} parent=5 // pred_fallthru
      _
  $region6: #{tpu_custom_call.1} parent=0 // loop_footer
    %s17 = sadd.s32 1, %s13
  $region7: #{tpu_custom_call.1} parent=0 // loop_footer_branch
    %12 = sbr.rel target = $region3
  $region8: #{tpu_custom_call.1} parent=0 // loop_exit
    _

</llo_original>
